<compile_context>
chip_gen: v5e
topology: v5e:2x2
jax: 0.10.0
libtpu: 0.0.40
codegen_flags: <defaults>
</compile_context>

<pallas_src>
import jax
import jax.numpy as jnp
from jax.experimental import pallas as pl
from jax.experimental.pallas import tpu as pltpu


def se_block_kernel(x_ref, w1_ref, b1_ref, w2_ref, b2_ref, o_ref):
    # x_ref: (TB, C, L)   w1_ref: (C, H)   b1_ref: (1, H)
    # w2_ref: (H, C)      b2_ref: (1, C)   o_ref:  (TB, C, L)

    # Squeeze: adaptive_avg_pool1d(x, 1) == exact f32 mean over the last axis.
    # First read pass over the block.
    y = jnp.mean(x_ref[...].astype(jnp.float32), axis=-1)          # (TB, C)

    # Excitation MLP (tiny; MXU latency only, never the bottleneck).
    h = jnp.dot(y, w1_ref[...], preferred_element_type=jnp.float32) + b1_ref[...]
    h = jnp.maximum(h, 0.0)                                         # ReLU, (TB, H)
    s = jax.nn.sigmoid(
        jnp.dot(h, w2_ref[...], preferred_element_type=jnp.float32) + b2_ref[...]
    )                                                               # (TB, C)

    # Scale: re-read x_ref instead of holding the 2-4 MiB block live across the
    # MLP (it cannot sit in the 256 KiB vreg file; re-reading keeps this at
    # exactly 2 read passes + 1 store pass, no extra VMEM round-trip).
    o_ref[...] = (x_ref[...] * s[:, :, None]).astype(o_ref.dtype)


def _tpu_vmem_capacity_bytes():
    """Physical per-core VMEM: 128 MiB on v5e/v6e, 64 MiB on v7x.
    Conservative (v7x-sized) fallback if the query is unavailable."""
    try:
        return int(pltpu.get_tpu_info().vmem_capacity_bytes)
    except Exception:
        return 64 << 20


def _pick_block_b(B, bytes_per_sample, *, target_bytes, min_grid_steps=4):
    """Pick a batch block that divides B exactly, keeps one block around
    target_bytes, and (when gridded) leaves >= min_grid_steps grid steps so a
    v7x chip (2 TensorCores splitting a "parallel" grid) still gets >= 2 blocks
    per core to double-buffer.  Tiny problems get a single block: at that size
    the ~0.35 us per-grid-step overhead exceeds the actual HBM traffic."""
    total = B * bytes_per_sample
    if B == 1 or total <= target_bytes:
        return B
    cap = max(1, min(B, target_bytes // max(1, bytes_per_sample)))
    if B >= min_grid_steps:
        cap = min(cap, B // min_grid_steps)
    else:
        cap = 1                      # B in {2, 3} with huge samples: 1 per step
    cap = max(cap, 1)
    tb = cap
    while B % tb:                    # block_b must divide B (no partial blocks)
        tb -= 1
    return max(tb, 1)


def se_block(x, w1, b1, w2, b2, *, block_b=None, out_dtype=None,
             in_place=False, input_buffer_count=None):
    """SEBlock forward.

    x: (B, C, L); weights are the PyTorch Linear weights pre-transposed so the
    kernel does plain row-major matmuls: w1 = fc1.weight.T (C, H), b1 (H,),
    w2 = fc2.weight.T (H, C), b2 (C,).

    out_dtype: optional narrower output dtype (e.g. jnp.bfloat16) -- cuts HBM
      write traffic ~25% on this bandwidth-bound op; default matches x to keep
      exact PyTorch f32 semantics.
    in_place: alias the output onto x's HBM buffer (only when the caller will
      not reuse x and out_dtype == x.dtype).
    input_buffer_count: optional pipeline depth for the x stream (v7x sweep
      knob; needs >= ~3 grid steps per core to matter).
    """
    B, C, L = x.shape
    H = w1.shape[1]
    itemsize = x.dtype.itemsize
    out_dtype = x.dtype if out_dtype is None else jnp.dtype(out_dtype)

    b1_2d = b1.reshape(1, H)
    b2_2d = b2.reshape(1, C)

    # Generation-aware budgeting.
    phys_vmem = _tpu_vmem_capacity_bytes()
    big_vmem = phys_vmem >= (100 << 20)                 # v5e/v6e (128 MiB) vs v7x (64 MiB)
    target_bytes = (4 << 20) if big_vmem else (2 << 20)  # already ~85%+ of HBM roofline
    scoped_cap = (64 << 20) if big_vmem else (32 << 20)

    if block_b is None:
        block_b = _pick_block_b(B, C * L * itemsize, target_bytes=target_bytes)
    assert B % block_b == 0, (B, block_b)
    grid = (B // block_b,)

    # VMEM in flight: 2 double-buffered input blocks + 2 output blocks +
    # (double-buffered) params + headroom for kernel-internal temporaries.
    in_blk = block_b * C * L * itemsize
    out_blk = block_b * C * L * out_dtype.itemsize
    param_bytes = (w1.size + w2.size + b1_2d.size + b2_2d.size) * itemsize
    vmem_need = 2 * in_blk + 2 * out_blk + 2 * param_bytes + (4 << 20)
    # Request only what we need (don't steal scoped VMEM from neighboring
    # fusions); cap at the generation's safe scoped budget unless a single
    # sample is simply too large to fit under the cap.
    # TODO(synk): for very long L (one (C, L) slab x 4 buffers > scoped cap),
    # add an L-tiled two-pass mean instead of just raising the limit.
    if vmem_need <= scoped_cap:
        vmem_limit = vmem_need
    else:
        vmem_limit = min(vmem_need, phys_vmem - (8 << 20))

    cost = pl.CostEstimate(
        flops=2 * B * C * L + 4 * B * C * H,            # mean-adds + scale + tiny MLP
        transcendentals=B * C,                          # sigmoid
        bytes_accessed=B * C * L * (itemsize + out_dtype.itemsize) + param_bytes,
    )

    # TODO(synk): if L is not a multiple of 128, stores become masked
    # (vst.msk); a lane-dense path would flatten (C, L)->C*L for the
    # scale/store and do the mean as an MXU contraction with ones(L)/L.
    if input_buffer_count is None:
        x_spec = pl.BlockSpec((block_b, C, L), lambda i: (i, 0, 0))
    else:
        x_spec = pl.BlockSpec((block_b, C, L), lambda i: (i, 0, 0),
                              pipeline_mode=pl.Buffered(input_buffer_count))

    aliases = {}
    if in_place and out_dtype == x.dtype:
        aliases = {0: 0}                                # overwrite x's HBM buffer

    return pl.pallas_call(
        se_block_kernel,
        out_shape=jax.ShapeDtypeStruct((B, C, L), out_dtype),
        grid=grid,
        in_specs=[
            x_spec,
            pl.BlockSpec((C, H), lambda i: (0, 0)),
            pl.BlockSpec((1, H), lambda i: (0, 0)),
            pl.BlockSpec((H, C), lambda i: (0, 0)),
            pl.BlockSpec((1, C), lambda i: (0, 0)),
        ],
        out_specs=pl.BlockSpec((block_b, C, L), lambda i: (i, 0, 0)),
        compiler_params=pltpu.CompilerParams(
            dimension_semantics=("parallel",),          # batch blocks are independent
            vmem_limit_bytes=int(vmem_limit),
        ),
        cost_estimate=cost,
        input_output_aliases=aliases,
    )(x, w1, b1_2d, w2, b2_2d)


def se_block_ref(x, w1, b1, w2, b2):
    """Pure-JAX reference mirroring the PyTorch forward."""
    y = jnp.mean(x, axis=-1)                            # (B, C)
    h = jnp.maximum(y @ w1 + b1, 0.0)                   # (B, H)
    s = jax.nn.sigmoid(h @ w2 + b2)                     # (B, C)
    return x * s[:, :, None]


if __name__ == "__main__":
    # Small shapes consistent with the module: SEBlock(in_channels=64, reduction=16).
    # L = 128 keeps the streamed last dimension lane-dense (full 128-lane vregs).
    B, C, L = 8, 64, 128
    reduction = 16
    H = C // reduction                                  # 4

    key = jax.random.PRNGKey(0)
    kx, k1w, k1b, k2w, k2b = jax.random.split(key, 5)

    x = jax.random.normal(kx, (B, C, L), dtype=jnp.float32)

    # Deterministic nn.Linear-style uniform init.
    bound1 = 1.0 / (C ** 0.5)
    bound2 = 1.0 / (H ** 0.5)
    # fc1.weight is (H, C) in PyTorch; pass it transposed as (C, H).
    w1 = jax.random.uniform(k1w, (C, H), jnp.float32, -bound1, bound1)
    b1 = jax.random.uniform(k1b, (H,), jnp.float32, -bound1, bound1)
    # fc2.weight is (C, H) in PyTorch; pass it transposed as (H, C).
    w2 = jax.random.uniform(k2w, (H, C), jnp.float32, -bound2, bound2)
    b2 = jax.random.uniform(k2b, (C,), jnp.float32, -bound2, bound2)

    out = jax.block_until_ready(se_block(x, w1, b1, w2, b2))
    ref = se_block_ref(x, w1, b1, w2, b2)

    assert out.shape == (B, C, L)
    assert out.dtype == x.dtype
    assert jnp.allclose(out, ref, atol=1e-5, rtol=1e-5), float(
        jnp.max(jnp.abs(out - ref)))

    print("KERNEL_OK")
</pallas_src>

<mosaic_0001>
module attributes {stable_mosaic.version = 11 : i64} {
  func.func @se_block_kernel(%arg0: i32, %arg1: memref<8x64x128xf32, #tpu.memory_space<vmem>>, %arg2: memref<64x4xf32, #tpu.memory_space<vmem>>, %arg3: memref<1x4xf32, #tpu.memory_space<vmem>>, %arg4: memref<4x64xf32, #tpu.memory_space<vmem>>, %arg5: memref<1x64xf32, #tpu.memory_space<vmem>>, %arg6: memref<8x64x128xf32, #tpu.memory_space<vmem>>) attributes {dimension_semantics = [#tpu.dimension_semantics<parallel>], iteration_bounds = array<i64: 1>, scalar_prefetch = 0 : i64, scratch_operands = 0 : i64, tpu.core_type = #tpu.core_type<tc>, window_params = [{transform_indices = @transform_0, window_bounds = array<i64: 8, 64, 128>}, {pipeline_mode = #tpu.pipeline_mode<synchronous>, transform_indices = @transform_1, window_bounds = array<i64: 64, 4>}, {pipeline_mode = #tpu.pipeline_mode<synchronous>, transform_indices = @transform_2, window_bounds = array<i64: 1, 4>}, {pipeline_mode = #tpu.pipeline_mode<synchronous>, transform_indices = @transform_3, window_bounds = array<i64: 4, 64>}, {pipeline_mode = #tpu.pipeline_mode<synchronous>, transform_indices = @transform_4, window_bounds = array<i64: 1, 64>}, {transform_indices = @transform_5, window_bounds = array<i64: 8, 64, 128>}]} {
    %c0 = arith.constant 0 : index
    %c0_0 = arith.constant 0 : index
    %c0_1 = arith.constant 0 : index
    %0 = vector.load %arg1[%c0, %c0_0, %c0_1] : memref<8x64x128xf32, #tpu.memory_space<vmem>>, vector<8x64x128xf32>
    %cst = arith.constant dense<0.000000e+00> : vector<8x64xf32>
    %1 = vector.multi_reduction <add>, %0, %cst [2] : vector<8x64x128xf32> to vector<8x64xf32>
    %cst_2 = arith.constant 1.280000e+02 : f32
    %2 = vector.broadcast %cst_2 : f32 to vector<8x64xf32>
    %3 = arith.divf %1, %2 : vector<8x64xf32>
    %c0_3 = arith.constant 0 : index
    %c0_4 = arith.constant 0 : index
    %4 = vector.load %arg2[%c0_3, %c0_4] : memref<64x4xf32, #tpu.memory_space<vmem>>, vector<64x4xf32>
    %cst_5 = arith.constant dense<0.000000e+00> : vector<8x4xf32>
    %5 = tpu.matmul %3, %4, %cst_5 {dimension_numbers = #tpu.dot_dimension_numbers<[1], [0], [0], [1], [0, 0, 1, 1], [], []>} : vector<8x64xf32>, vector<64x4xf32>, vector<8x4xf32> -> vector<8x4xf32>
    %c0_6 = arith.constant 0 : index
    %c0_7 = arith.constant 0 : index
    %6 = vector.load %arg3[%c0_6, %c0_7] : memref<1x4xf32, #tpu.memory_space<vmem>>, vector<1x4xf32>
    %7 = vector.broadcast %6 : vector<1x4xf32> to vector<8x4xf32>
    %8 = arith.addf %5, %7 : vector<8x4xf32>
    %cst_8 = arith.constant 0.000000e+00 : f32
    %9 = vector.broadcast %cst_8 : f32 to vector<8x4xf32>
    %10 = arith.maximumf %8, %9 : vector<8x4xf32>
    %c0_9 = arith.constant 0 : index
    %c0_10 = arith.constant 0 : index
    %11 = vector.load %arg4[%c0_9, %c0_10] : memref<4x64xf32, #tpu.memory_space<vmem>>, vector<4x64xf32>
    %cst_11 = arith.constant dense<0.000000e+00> : vector<8x64xf32>
    %12 = tpu.matmul %10, %11, %cst_11 {dimension_numbers = #tpu.dot_dimension_numbers<[1], [0], [0], [1], [0, 0, 1, 1], [], []>} : vector<8x4xf32>, vector<4x64xf32>, vector<8x64xf32> -> vector<8x64xf32>
    %c0_12 = arith.constant 0 : index
    %c0_13 = arith.constant 0 : index
    %13 = vector.load %arg5[%c0_12, %c0_13] : memref<1x64xf32, #tpu.memory_space<vmem>>, vector<1x64xf32>
    %14 = vector.broadcast %13 : vector<1x64xf32> to vector<8x64xf32>
    %15 = arith.addf %12, %14 : vector<8x64xf32>
    %16 = arith.negf %15 : vector<8x64xf32>
    %17 = math.exp %16 : vector<8x64xf32>
    %cst_14 = arith.constant 1.000000e+00 : f32
    %18 = vector.broadcast %cst_14 : f32 to vector<8x64xf32>
    %19 = arith.addf %18, %17 : vector<8x64xf32>
    %20 = arith.divf %18, %19 : vector<8x64xf32>
    %c0_15 = arith.constant 0 : index
    %c0_16 = arith.constant 0 : index
    %c0_17 = arith.constant 0 : index
    %21 = vector.load %arg1[%c0_15, %c0_16, %c0_17] : memref<8x64x128xf32, #tpu.memory_space<vmem>>, vector<8x64x128xf32>
    %22 = vector.shape_cast %20 : vector<8x64xf32> to vector<8x64x1xf32>
    %23 = vector.broadcast %22 : vector<8x64x1xf32> to vector<8x64x128xf32>
    %24 = arith.mulf %21, %23 : vector<8x64x128xf32>
    %c0_18 = arith.constant 0 : index
    %c0_19 = arith.constant 0 : index
    %c0_20 = arith.constant 0 : index
    %25 = vector.load %arg6[%c0_18, %c0_19, %c0_20] : memref<8x64x128xf32, #tpu.memory_space<vmem>>, vector<8x64x128xf32>
    tpu.vector_store %arg6[%c0_18, %c0_19, %c0_20], %24 {strides = array<i32>} : memref<8x64x128xf32, #tpu.memory_space<vmem>>, vector<8x64x128xf32>,
    return
  }
  func.func @transform_0(%arg0: i32) -> (i32, i32, i32) {
    %c0_i32 = arith.constant 0 : i32
    %c0_i32_0 = arith.constant 0 : i32
    %c0_i32_1 = arith.constant 0 : i32
    return %arg0, %c0_i32, %c0_i32_0 : i32, i32, i32
  }
  func.func @transform_1(%arg0: i32) -> (i32, i32) {
    %c0_i32 = arith.constant 0 : i32
    %c0_i32_0 = arith.constant 0 : i32
    %c0_i32_1 = arith.constant 0 : i32
    return %c0_i32, %c0_i32_0 : i32, i32
  }
  func.func @transform_2(%arg0: i32) -> (i32, i32) {
    %c0_i32 = arith.constant 0 : i32
    %c0_i32_0 = arith.constant 0 : i32
    %c0_i32_1 = arith.constant 0 : i32
    return %c0_i32, %c0_i32_0 : i32, i32
  }
  func.func @transform_3(%arg0: i32) -> (i32, i32) {
    %c0_i32 = arith.constant 0 : i32
    %c0_i32_0 = arith.constant 0 : i32
    %c0_i32_1 = arith.constant 0 : i32
    return %c0_i32, %c0_i32_0 : i32, i32
  }
  func.func @transform_4(%arg0: i32) -> (i32, i32) {
    %c0_i32 = arith.constant 0 : i32
    %c0_i32_0 = arith.constant 0 : i32
    %c0_i32_1 = arith.constant 0 : i32
    return %c0_i32, %c0_i32_0 : i32, i32
  }
  func.func @transform_5(%arg0: i32) -> (i32, i32, i32) {
    %c0_i32 = arith.constant 0 : i32
    %c0_i32_0 = arith.constant 0 : i32
    %c0_i32_1 = arith.constant 0 : i32
    return %arg0, %c0_i32, %c0_i32_0 : i32, i32, i32
  }
}

</mosaic_0001>

<llo_original>
// kernel: tpu_custom_call.1
$region0: #{tpu_custom_call.1}
  #allocation0 [shape = 'u32[]', space=smem, size = 0x4, offset = 0x4, fixed_abs, tag = 'smem constant byte address 0x4 - core index']
  #allocation1 [shape = 'u32[72,128]{1,0:T(1,128)}', space=vmem, size = 0x9000, scoped, tag = 'internal scratch']
  %s0 = inlined_call_operand.hbm [shape: f32[8,64,128], index: 0, kind: input, shape index: {}]
  %s1 = inlined_call_operand.vmem [shape: f32[64,4], index: 1, kind: input, shape index: {}]
  %s2 = inlined_call_operand.vmem [shape: f32[1,4], index: 2, kind: input, shape index: {}]
  %s3 = inlined_call_operand.vmem [shape: f32[4,64], index: 3, kind: input, shape index: {}]
  %s4 = inlined_call_operand.vmem [shape: f32[1,64], index: 4, kind: input, shape index: {}]
  %s5 = inlined_call_operand.hbm [shape: f32[8,64,128], index: 5, kind: output, shape index: {}]
  %s6 = sld [smem:[#allocation0]]
  $region34: #{tpu_custom_call.1} parent=0
    _
  %s8 = ssub.s32 1, %s6
  %s9 = scalar_select 0, %s8, %s6
  $region1: #{tpu_custom_call.1} parent=0
    #allocation2 [shape = 'u8[262144]{0}', space=vmem, size = 0x40000, scoped, tag = 'input window, operand 0, single buffered']
    #allocation3 [shape = 's32[1]{0}', space=sflag, size = 0x4, scoped, tag = 'scoped memory for tpu_custom_call.1']
    #allocation4 [shape = 's32[1]{0}', space=sflag, size = 0x4, scoped, tag = 'scoped memory for tpu_custom_call.1']
    #allocation5 [shape = 'u8[262144]{0}', space=vmem, size = 0x40000, scoped, tag = 'output window, operand 0, single buffered']
    %10 = vsyncpa [#allocation3], 0
    %11 = vsyncpa [#allocation4], 0
    // Predicated region
    $region2: #{tpu_custom_call.1} parent=1 // pred_check
      _
    $region3: #{tpu_custom_call.1} parent=1 // pred_check_branch
      %13 = sbr.rel (0) target = $region5
    $region4: #{tpu_custom_call.1} parent=1 // pred_region
      %15 = vsyncadd [#allocation3], 0
      %s16 = sshll.u32 %s0, 4
      %s17 = int_to_ptr.hbm [resolvable:$true] %s16
      %s18 = sshll.u32 [#allocation2], 4
      %s19 = int_to_ptr.vmem [resolvable:$true] %s18
      %24 = dma.hbm_to_vmem [thread:$0]  %s17, 8192, %s19, [#allocation3], 128, 128, 8
    $region5: #{tpu_custom_call.1} parent=1 // pred_fallthru
      _
    // Predicated region
    $region6: #{tpu_custom_call.1} parent=1 // pred_check
      _
    $region7: #{tpu_custom_call.1} parent=1 // pred_check_branch
      %26 = sbr.rel (0) target = $region9
    $region8: #{tpu_custom_call.1} parent=1 // pred_region
      _
    $region9: #{tpu_custom_call.1} parent=1 // pred_fallthru
      _
    // Predicated region
    $region10: #{tpu_custom_call.1} parent=1 // pred_check
      _
    $region11: #{tpu_custom_call.1} parent=1 // pred_check_branch
      %28 = sbr.rel (0) target = $region13
    $region12: #{tpu_custom_call.1} parent=1 // pred_region
      _
    $region13: #{tpu_custom_call.1} parent=1 // pred_fallthru
      _
    // Predicated region
    $region14: #{tpu_custom_call.1} parent=1 // pred_check
      _
    $region15: #{tpu_custom_call.1} parent=1 // pred_check_branch
      %30 = sbr.rel (0) target = $region17
    $region16: #{tpu_custom_call.1} parent=1 // pred_region
      _
    $region17: #{tpu_custom_call.1} parent=1 // pred_fallthru
      _
    // Predicated region
    $region18: #{tpu_custom_call.1} parent=1 // pred_check
      _
    $region19: #{tpu_custom_call.1} parent=1 // pred_check_branch
      %32 = sbr.rel (0) target = $region21
    $region20: #{tpu_custom_call.1} parent=1 // pred_region
      _
    $region21: #{tpu_custom_call.1} parent=1 // pred_fallthru
      _
    // Predicated region
    $region22: #{tpu_custom_call.1} parent=1 // pred_check
      _
    $region23: #{tpu_custom_call.1} parent=1 // pred_check_branch
      %34 = sbr.rel (0) target = $region25
    $region24: #{tpu_custom_call.1} parent=1 // pred_region
      %36 = dma.done [#allocation3], 8192
    $region25: #{tpu_custom_call.1} parent=1 // pred_fallthru
      _
    %v37 = vld [vmem:[#allocation2] sm:$0xff]
    %v38 = vld [vmem:[#allocation2 + $0x8] sm:$0xff]
    %v39 = vld [vmem:[#allocation2 + $0x10] sm:$0xff]
    %v40 = vld [vmem:[#allocation2 + $0x18] sm:$0xff]
    %v41 = vld [vmem:[#allocation2 + $0x20] sm:$0xff]
    %v42 = vld [vmem:[#allocation2 + $0x28] sm:$0xff]
    %v43 = vld [vmem:[#allocation2 + $0x30] sm:$0xff]
    %v44 = vld [vmem:[#allocation2 + $0x38] sm:$0xff]
    %v45 = vld [vmem:[#allocation2 + $0x40] sm:$0xff]
    %v46 = vld [vmem:[#allocation2 + $0x48] sm:$0xff]
    %v47 = vld [vmem:[#allocation2 + $0x50] sm:$0xff]
    %v48 = vld [vmem:[#allocation2 + $0x58] sm:$0xff]
    %v49 = vld [vmem:[#allocation2 + $0x60] sm:$0xff]
    %v50 = vld [vmem:[#allocation2 + $0x68] sm:$0xff]
    %v51 = vld [vmem:[#allocation2 + $0x70] sm:$0xff]
    %v52 = vld [vmem:[#allocation2 + $0x78] sm:$0xff]
    %v53 = vld [vmem:[#allocation2 + $0x80] sm:$0xff]
    %v54 = vld [vmem:[#allocation2 + $0x88] sm:$0xff]
    %v55 = vld [vmem:[#allocation2 + $0x90] sm:$0xff]
    %v56 = vld [vmem:[#allocation2 + $0x98] sm:$0xff]
    %v57 = vld [vmem:[#allocation2 + $0xa0] sm:$0xff]
    %v58 = vld [vmem:[#allocation2 + $0xa8] sm:$0xff]
    %v59 = vld [vmem:[#allocation2 + $0xb0] sm:$0xff]
    %v60 = vld [vmem:[#allocation2 + $0xb8] sm:$0xff]
    %v61 = vld [vmem:[#allocation2 + $0xc0] sm:$0xff]
    %v62 = vld [vmem:[#allocation2 + $0xc8] sm:$0xff]
    %v63 = vld [vmem:[#allocation2 + $0xd0] sm:$0xff]
    %v64 = vld [vmem:[#allocation2 + $0xd8] sm:$0xff]
    %v65 = vld [vmem:[#allocation2 + $0xe0] sm:$0xff]
    %v66 = vld [vmem:[#allocation2 + $0xe8] sm:$0xff]
    %v67 = vld [vmem:[#allocation2 + $0xf0] sm:$0xff]
    %v68 = vld [vmem:[#allocation2 + $0xf8] sm:$0xff]
    %v69 = vld [vmem:[#allocation2 + $0x100] sm:$0xff]
    %v70 = vld [vmem:[#allocation2 + $0x108] sm:$0xff]
    %v71 = vld [vmem:[#allocation2 + $0x110] sm:$0xff]
    %v72 = vld [vmem:[#allocation2 + $0x118] sm:$0xff]
    %v73 = vld [vmem:[#allocation2 + $0x120] sm:$0xff]
    %v74 = vld [vmem:[#allocation2 + $0x128] sm:$0xff]
    %v75 = vld [vmem:[#allocation2 + $0x130] sm:$0xff]
    %v76 = vld [vmem:[#allocation2 + $0x138] sm:$0xff]
    %v77 = vld [vmem:[#allocation2 + $0x140] sm:$0xff]
    %v78 = vld [vmem:[#allocation2 + $0x148] sm:$0xff]
    %v79 = vld [vmem:[#allocation2 + $0x150] sm:$0xff]
    %v80 = vld [vmem:[#allocation2 + $0x158] sm:$0xff]
    %v81 = vld [vmem:[#allocation2 + $0x160] sm:$0xff]
    %v82 = vld [vmem:[#allocation2 + $0x168] sm:$0xff]
    %v83 = vld [vmem:[#allocation2 + $0x170] sm:$0xff]
    %v84 = vld [vmem:[#allocation2 + $0x178] sm:$0xff]
    %v85 = vld [vmem:[#allocation2 + $0x180] sm:$0xff]
    %v86 = vld [vmem:[#allocation2 + $0x188] sm:$0xff]
    %v87 = vld [vmem:[#allocation2 + $0x190] sm:$0xff]
    %v88 = vld [vmem:[#allocation2 + $0x198] sm:$0xff]
    %v89 = vld [vmem:[#allocation2 + $0x1a0] sm:$0xff]
    %v90 = vld [vmem:[#allocation2 + $0x1a8] sm:$0xff]
    %v91 = vld [vmem:[#allocation2 + $0x1b0] sm:$0xff]
    %v92 = vld [vmem:[#allocation2 + $0x1b8] sm:$0xff]
    %v93 = vld [vmem:[#allocation2 + $0x1c0] sm:$0xff]
    %v94 = vld [vmem:[#allocation2 + $0x1c8] sm:$0xff]
    %v95 = vld [vmem:[#allocation2 + $0x1d0] sm:$0xff]
    %v96 = vld [vmem:[#allocation2 + $0x1d8] sm:$0xff]
    %v97 = vld [vmem:[#allocation2 + $0x1e0] sm:$0xff]
    %v98 = vld [vmem:[#allocation2 + $0x1e8] sm:$0xff]
    %v99 = vld [vmem:[#allocation2 + $0x1f0] sm:$0xff]
    %v100 = vld [vmem:[#allocation2 + $0x1f8] sm:$0xff]
    %101 = vadd.xlane.f32.xlu0 %v37
    %v102 = vpop.xlane.xlu0 %101
    %103 = vadd.xlane.f32.xlu0 %v38
    %v104 = vpop.xlane.xlu0 %103
    %105 = vadd.xlane.f32.xlu0 %v39
    %v106 = vpop.xlane.xlu0 %105
    %107 = vadd.xlane.f32.xlu0 %v40
    %v108 = vpop.xlane.xlu0 %107
    %109 = vadd.xlane.f32.xlu0 %v41
    %v110 = vpop.xlane.xlu0 %109
    %111 = vadd.xlane.f32.xlu0 %v42
    %v112 = vpop.xlane.xlu0 %111
    %113 = vadd.xlane.f32.xlu0 %v43
    %v114 = vpop.xlane.xlu0 %113
    %115 = vadd.xlane.f32.xlu0 %v44
    %v116 = vpop.xlane.xlu0 %115
    %117 = vadd.xlane.f32.xlu0 %v45
    %v118 = vpop.xlane.xlu0 %117
    %119 = vadd.xlane.f32.xlu0 %v46
    %v120 = vpop.xlane.xlu0 %119
    %121 = vadd.xlane.f32.xlu0 %v47
    %v122 = vpop.xlane.xlu0 %121
    %123 = vadd.xlane.f32.xlu0 %v48
    %v124 = vpop.xlane.xlu0 %123
    %125 = vadd.xlane.f32.xlu0 %v49
    %v126 = vpop.xlane.xlu0 %125
    %127 = vadd.xlane.f32.xlu0 %v50
    %v128 = vpop.xlane.xlu0 %127
    %129 = vadd.xlane.f32.xlu0 %v51
    %v130 = vpop.xlane.xlu0 %129
    %131 = vadd.xlane.f32.xlu0 %v52
    %v132 = vpop.xlane.xlu0 %131
    %133 = vadd.xlane.f32.xlu0 %v53
    %v134 = vpop.xlane.xlu0 %133
    %135 = vadd.xlane.f32.xlu0 %v54
    %v136 = vpop.xlane.xlu0 %135
    %137 = vadd.xlane.f32.xlu0 %v55
    %v138 = vpop.xlane.xlu0 %137
    %139 = vadd.xlane.f32.xlu0 %v56
    %v140 = vpop.xlane.xlu0 %139
    %141 = vadd.xlane.f32.xlu0 %v57
    %v142 = vpop.xlane.xlu0 %141
    %143 = vadd.xlane.f32.xlu0 %v58
    %v144 = vpop.xlane.xlu0 %143
    %145 = vadd.xlane.f32.xlu0 %v59
    %v146 = vpop.xlane.xlu0 %145
    %147 = vadd.xlane.f32.xlu0 %v60
    %v148 = vpop.xlane.xlu0 %147
    %149 = vadd.xlane.f32.xlu0 %v61
    %v150 = vpop.xlane.xlu0 %149
    %151 = vadd.xlane.f32.xlu0 %v62
    %v152 = vpop.xlane.xlu0 %151
    %153 = vadd.xlane.f32.xlu0 %v63
    %v154 = vpop.xlane.xlu0 %153
    %155 = vadd.xlane.f32.xlu0 %v64
    %v156 = vpop.xlane.xlu0 %155
    %157 = vadd.xlane.f32.xlu0 %v65
    %v158 = vpop.xlane.xlu0 %157
    %159 = vadd.xlane.f32.xlu0 %v66
    %v160 = vpop.xlane.xlu0 %159
    %161 = vadd.xlane.f32.xlu0 %v67
    %v162 = vpop.xlane.xlu0 %161
    %163 = vadd.xlane.f32.xlu0 %v68
    %v164 = vpop.xlane.xlu0 %163
    %165 = vadd.xlane.f32.xlu0 %v69
    %v166 = vpop.xlane.xlu0 %165
    %167 = vadd.xlane.f32.xlu0 %v70
    %v168 = vpop.xlane.xlu0 %167
    %169 = vadd.xlane.f32.xlu0 %v71
    %v170 = vpop.xlane.xlu0 %169
    %171 = vadd.xlane.f32.xlu0 %v72
    %v172 = vpop.xlane.xlu0 %171
    %173 = vadd.xlane.f32.xlu0 %v73
    %v174 = vpop.xlane.xlu0 %173
    %175 = vadd.xlane.f32.xlu0 %v74
    %v176 = vpop.xlane.xlu0 %175
    %177 = vadd.xlane.f32.xlu0 %v75
    %v178 = vpop.xlane.xlu0 %177
    %179 = vadd.xlane.f32.xlu0 %v76
    %v180 = vpop.xlane.xlu0 %179
    %181 = vadd.xlane.f32.xlu0 %v77
    %v182 = vpop.xlane.xlu0 %181
    %183 = vadd.xlane.f32.xlu0 %v78
    %v184 = vpop.xlane.xlu0 %183
    %185 = vadd.xlane.f32.xlu0 %v79
    %v186 = vpop.xlane.xlu0 %185
    %187 = vadd.xlane.f32.xlu0 %v80
    %v188 = vpop.xlane.xlu0 %187
    %189 = vadd.xlane.f32.xlu0 %v81
    %v190 = vpop.xlane.xlu0 %189
    %191 = vadd.xlane.f32.xlu0 %v82
    %v192 = vpop.xlane.xlu0 %191
    %193 = vadd.xlane.f32.xlu0 %v83
    %v194 = vpop.xlane.xlu0 %193
    %195 = vadd.xlane.f32.xlu0 %v84
    %v196 = vpop.xlane.xlu0 %195
    %197 = vadd.xlane.f32.xlu0 %v85
    %v198 = vpop.xlane.xlu0 %197
    %199 = vadd.xlane.f32.xlu0 %v86
    %v200 = vpop.xlane.xlu0 %199
    %201 = vadd.xlane.f32.xlu0 %v87
    %v202 = vpop.xlane.xlu0 %201
    %203 = vadd.xlane.f32.xlu0 %v88
    %v204 = vpop.xlane.xlu0 %203
    %205 = vadd.xlane.f32.xlu0 %v89
    %v206 = vpop.xlane.xlu0 %205
    %207 = vadd.xlane.f32.xlu0 %v90
    %v208 = vpop.xlane.xlu0 %207
    %209 = vadd.xlane.f32.xlu0 %v91
    %v210 = vpop.xlane.xlu0 %209
    %211 = vadd.xlane.f32.xlu0 %v92
    %v212 = vpop.xlane.xlu0 %211
    %213 = vadd.xlane.f32.xlu0 %v93
    %v214 = vpop.xlane.xlu0 %213
    %215 = vadd.xlane.f32.xlu0 %v94
    %v216 = vpop.xlane.xlu0 %215
    %217 = vadd.xlane.f32.xlu0 %v95
    %v218 = vpop.xlane.xlu0 %217
    %219 = vadd.xlane.f32.xlu0 %v96
    %v220 = vpop.xlane.xlu0 %219
    %221 = vadd.xlane.f32.xlu0 %v97
    %v222 = vpop.xlane.xlu0 %221
    %223 = vadd.xlane.f32.xlu0 %v98
    %v224 = vpop.xlane.xlu0 %223
    %225 = vadd.xlane.f32.xlu0 %v99
    %v226 = vpop.xlane.xlu0 %225
    %227 = vadd.xlane.f32.xlu0 %v100
    %v228 = vpop.xlane.xlu0 %227
    %v229 = vrcp.pop 128.0
    %v230 = vmul.f32 128.0, %v229
    %v231 = vsub.f32 1.0, %v230
    %v232 = vmul.f32 %v229, %v231
    %v233 = vadd.f32 %v229, %v232
    %vm234 = vweird.f32 %v229
    %v235 = vsel %vm234, %v229, %v233
    %v236 = vmul.f32 %v102, %v235
    %v237 = vmul.f32 %v104, %v235
    %v238 = vmul.f32 %v106, %v235
    %v239 = vmul.f32 %v108, %v235
    %v240 = vmul.f32 %v110, %v235
    %v241 = vmul.f32 %v112, %v235
    %v242 = vmul.f32 %v114, %v235
    %v243 = vmul.f32 %v116, %v235
    %v244 = vmul.f32 %v118, %v235
    %v245 = vmul.f32 %v120, %v235
    %v246 = vmul.f32 %v122, %v235
    %v247 = vmul.f32 %v124, %v235
    %v248 = vmul.f32 %v126, %v235
    %v249 = vmul.f32 %v128, %v235
    %v250 = vmul.f32 %v130, %v235
    %v251 = vmul.f32 %v132, %v235
    %v252 = vmul.f32 %v134, %v235
    %v253 = vmul.f32 %v136, %v235
    %v254 = vmul.f32 %v138, %v235
    %v255 = vmul.f32 %v140, %v235
    %v256 = vmul.f32 %v142, %v235
    %v257 = vmul.f32 %v144, %v235
    %v258 = vmul.f32 %v146, %v235
    %v259 = vmul.f32 %v148, %v235
    %v260 = vmul.f32 %v150, %v235
    %v261 = vmul.f32 %v152, %v235
    %v262 = vmul.f32 %v154, %v235
    %v263 = vmul.f32 %v156, %v235
    %v264 = vmul.f32 %v158, %v235
    %v265 = vmul.f32 %v160, %v235
    %v266 = vmul.f32 %v162, %v235
    %v267 = vmul.f32 %v164, %v235
    %v268 = vmul.f32 %v166, %v235
    %v269 = vmul.f32 %v168, %v235
    %v270 = vmul.f32 %v170, %v235
    %v271 = vmul.f32 %v172, %v235
    %v272 = vmul.f32 %v174, %v235
    %v273 = vmul.f32 %v176, %v235
    %v274 = vmul.f32 %v178, %v235
    %v275 = vmul.f32 %v180, %v235
    %v276 = vmul.f32 %v182, %v235
    %v277 = vmul.f32 %v184, %v235
    %v278 = vmul.f32 %v186, %v235
    %v279 = vmul.f32 %v188, %v235
    %v280 = vmul.f32 %v190, %v235
    %v281 = vmul.f32 %v192, %v235
    %v282 = vmul.f32 %v194, %v235
    %v283 = vmul.f32 %v196, %v235
    %v284 = vmul.f32 %v198, %v235
    %v285 = vmul.f32 %v200, %v235
    %v286 = vmul.f32 %v202, %v235
    %v287 = vmul.f32 %v204, %v235
    %v288 = vmul.f32 %v206, %v235
    %v289 = vmul.f32 %v208, %v235
    %v290 = vmul.f32 %v210, %v235
    %v291 = vmul.f32 %v212, %v235
    %v292 = vmul.f32 %v214, %v235
    %v293 = vmul.f32 %v216, %v235
    %v294 = vmul.f32 %v218, %v235
    %v295 = vmul.f32 %v220, %v235
    %v296 = vmul.f32 %v222, %v235
    %v297 = vmul.f32 %v224, %v235
    %v298 = vmul.f32 %v226, %v235
    %v299 = vmul.f32 %v228, %v235
    %v300 = vld [vmem:[%s1] sm:$0xff]
    %v301 = vld [vmem:[%s1 + $0x8] sm:$0xff]
    %v302 = vld [vmem:[%s1 + $0x10] sm:$0xff]
    %v303 = vld [vmem:[%s1 + $0x18] sm:$0xff]
    %v304 = vld [vmem:[%s1 + $0x20] sm:$0xff]
    %v305 = vld [vmem:[%s1 + $0x28] sm:$0xff]
    %v306 = vld [vmem:[%s1 + $0x30] sm:$0xff]
    %v307 = vld [vmem:[%s1 + $0x38] sm:$0xff]
    %v308 = vld [vmem:[%s2] sm:$0x1]
    %v310 = vperm.slane %v308, 0
    %v376 = vlaneseq
    %v377 = vand.u32 %v376, 127
    %v378 = vperm.slane %v236, %v377
    %v379 = vadd.s32 %v377, 4294967288
    %v380 = vperm.slane %v237, %v379
    %vm381 = vcmask 130112
    %v382 = vsel %vm381, %v380, %v378
    %v383 = vadd.s32 %v377, 4294967280
    %v384 = vperm.slane %v238, %v383
    %vm385 = vcmask 195712
    %v386 = vsel %vm385, %v384, %v382
    %v387 = vadd.s32 %v377, 4294967272
    %v388 = vperm.slane %v239, %v387
    %vm389 = vcmask 261312
    %v390 = vsel %vm389, %v388, %v386
    %v391 = vadd.s32 %v377, 4294967264
    %v392 = vperm.slane %v240, %v391
    %vm393 = vcmask 326912
    %v394 = vsel %vm393, %v392, %v390
    %v395 = vadd.s32 %v377, 4294967256
    %v396 = vperm.slane %v241, %v395
    %vm397 = vcmask 392512
    %v398 = vsel %vm397, %v396, %v394
    %v399 = vadd.s32 %v377, 4294967248
    %v400 = vperm.slane %v242, %v399
    %vm401 = vcmask 458112
    %v402 = vsel %vm401, %v400, %v398
    %v403 = vadd.s32 %v377, 4294967240
    %v404 = vperm.slane %v243, %v403
    %vm405 = vcmask 523712
    %v406 = vsel %vm405, %v404, %v402
    %v407 = vperm.slane %v244, %v377
    %v408 = vperm.slane %v245, %v379
    %v409 = vsel %vm381, %v408, %v407
    %v410 = vperm.slane %v246, %v383
    %v411 = vsel %vm385, %v410, %v409
    %v412 = vperm.slane %v247, %v387
    %v413 = vsel %vm389, %v412, %v411
    %v414 = vperm.slane %v248, %v391
    %v415 = vsel %vm393, %v414, %v413
    %v416 = vperm.slane %v249, %v395
    %v417 = vsel %vm397, %v416, %v415
    %v418 = vperm.slane %v250, %v399
    %v419 = vsel %vm401, %v418, %v417
    %v420 = vperm.slane %v251, %v403
    %v421 = vsel %vm405, %v420, %v419
    %v422 = vperm.slane %v252, %v377
    %v423 = vperm.slane %v253, %v379
    %v424 = vsel %vm381, %v423, %v422
    %v425 = vperm.slane %v254, %v383
    %v426 = vsel %vm385, %v425, %v424
    %v427 = vperm.slane %v255, %v387
    %v428 = vsel %vm389, %v427, %v426
    %v429 = vperm.slane %v256, %v391
    %v430 = vsel %vm393, %v429, %v428
    %v431 = vperm.slane %v257, %v395
    %v432 = vsel %vm397, %v431, %v430
    %v433 = vperm.slane %v258, %v399
    %v434 = vsel %vm401, %v433, %v432
    %v435 = vperm.slane %v259, %v403
    %v436 = vsel %vm405, %v435, %v434
    %v437 = vperm.slane %v260, %v377
    %v438 = vperm.slane %v261, %v379
    %v439 = vsel %vm381, %v438, %v437
    %v440 = vperm.slane %v262, %v383
    %v441 = vsel %vm385, %v440, %v439
    %v442 = vperm.slane %v263, %v387
    %v443 = vsel %vm389, %v442, %v441
    %v444 = vperm.slane %v264, %v391
    %v445 = vsel %vm393, %v444, %v443
    %v446 = vperm.slane %v265, %v395
    %v447 = vsel %vm397, %v446, %v445
    %v448 = vperm.slane %v266, %v399
    %v449 = vsel %vm401, %v448, %v447
    %v450 = vperm.slane %v267, %v403
    %v451 = vsel %vm405, %v450, %v449
    %v452 = vperm.slane %v268, %v377
    %v453 = vperm.slane %v269, %v379
    %v454 = vsel %vm381, %v453, %v452
    %v455 = vperm.slane %v270, %v383
    %v456 = vsel %vm385, %v455, %v454
    %v457 = vperm.slane %v271, %v387
    %v458 = vsel %vm389, %v457, %v456
    %v459 = vperm.slane %v272, %v391
    %v460 = vsel %vm393, %v459, %v458
    %v461 = vperm.slane %v273, %v395
    %v462 = vsel %vm397, %v461, %v460
    %v463 = vperm.slane %v274, %v399
    %v464 = vsel %vm401, %v463, %v462
    %v465 = vperm.slane %v275, %v403
    %v466 = vsel %vm405, %v465, %v464
    %v467 = vperm.slane %v276, %v377
    %v468 = vperm.slane %v277, %v379
    %v469 = vsel %vm381, %v468, %v467
    %v470 = vperm.slane %v278, %v383
    %v471 = vsel %vm385, %v470, %v469
    %v472 = vperm.slane %v279, %v387
    %v473 = vsel %vm389, %v472, %v471
    %v474 = vperm.slane %v280, %v391
    %v475 = vsel %vm393, %v474, %v473
    %v476 = vperm.slane %v281, %v395
    %v477 = vsel %vm397, %v476, %v475
    %v478 = vperm.slane %v282, %v399
    %v479 = vsel %vm401, %v478, %v477
    %v480 = vperm.slane %v283, %v403
    %v481 = vsel %vm405, %v480, %v479
    %v482 = vperm.slane %v284, %v377
    %v483 = vperm.slane %v285, %v379
    %v484 = vsel %vm381, %v483, %v482
    %v485 = vperm.slane %v286, %v383
    %v486 = vsel %vm385, %v485, %v484
    %v487 = vperm.slane %v287, %v387
    %v488 = vsel %vm389, %v487, %v486
    %v489 = vperm.slane %v288, %v391
    %v490 = vsel %vm393, %v489, %v488
    %v491 = vperm.slane %v289, %v395
    %v492 = vsel %vm397, %v491, %v490
    %v493 = vperm.slane %v290, %v399
    %v494 = vsel %vm401, %v493, %v492
    %v495 = vperm.slane %v291, %v403
    %v496 = vsel %vm405, %v495, %v494
    %v497 = vperm.slane %v292, %v377
    %v498 = vperm.slane %v293, %v379
    %v499 = vsel %vm381, %v498, %v497
    %v500 = vperm.slane %v294, %v383
    %v501 = vsel %vm385, %v500, %v499
    %v502 = vperm.slane %v295, %v387
    %v503 = vsel %vm389, %v502, %v501
    %v504 = vperm.slane %v296, %v391
    %v505 = vsel %vm393, %v504, %v503
    %v506 = vperm.slane %v297, %v395
    %v507 = vsel %vm397, %v506, %v505
    %v508 = vperm.slane %v298, %v399
    %v509 = vsel %vm401, %v508, %v507
    %v510 = vperm.slane %v299, %v403
    %v511 = vsel %vm405, %v510, %v509
    %vm512 = vcmask 1041409
    %v513 = vsel %vm512, %v421, %v406
    %vm514 = vcmask 1042434
    %v515 = vsel %vm514, %v436, %v513
    %vm516 = vcmask 1043459
    %v517 = vsel %vm516, %v451, %v515
    %vm518 = vcmask 1044484
    %v519 = vsel %vm518, %v466, %v517
    %vm520 = vcmask 1045509
    %v521 = vsel %vm520, %v481, %v519
    %vm522 = vcmask 1046534
    %v523 = vsel %vm522, %v496, %v521
    %vm524 = vcmask 1047559
    %v525 = vsel %vm524, %v511, %v523
    %vm526 = vcmask 523264
    %v527 = vsel %vm526, %v525, 0
    %529 = vmatpush.msra.mxu0 0.0
    %530 = vmatpush.msra.mxu0 0.0
    %531 = vmatpush.msra.mxu0 0.0
    %532 = vmatpush.msra.mxu0 0.0
    %533 = vmatpush.msra.mxu0 0.0
    %534 = vmatpush.msra.mxu0 0.0
    %535 = vmatpush.msra.mxu0 0.0
    %536 = vmatpush.msra.mxu0 0.0
    %537 = vmatpush.msra.mxu0 %v307
    %538 = vmatpush.msra.mxu0 %v306
    %539 = vmatpush.msra.mxu0 %v305
    %540 = vmatpush.msra.mxu0 %v304
    %541 = vmatpush.msra.mxu0 %v303
    %542 = vmatpush.msra.mxu0 %v302
    %543 = vmatpush.msra.mxu0 %v301
    %544 = vmatpush.msra.mxu0 %v300
    %545 = vmatmul.f32.gmra.mxu0 %v527
    %v546 = vpop.f32.mrf.mxu0
    %v547 = vadd.f32 %v310, %v546
    %548 = vdwg.mxu0
    %v549 = vmax.f32 %v547, 0.0
    %v550 = vld [vmem:[%s3] sm:$0xf]
    %v551 = vld [vmem:[%s4] sm:$0x1]
    %v553 = vperm.slane %v551, 0
    %vm555 = vcmask 31744
    %v557 = vsel %vm555, %v549, 0
    %vm559 = vcmask 1043456
    %v561 = vsel %vm559, %v550, 0
    %563 = vmatpush.msra.mxu0 0.0
    %564 = vmatpush.msra.mxu0 0.0
    %565 = vmatpush.msra.mxu0 0.0
    %566 = vmatpush.msra.mxu0 0.0
    %567 = vmatpush.msra.mxu0 0.0
    %568 = vmatpush.msra.mxu0 0.0
    %569 = vmatpush.msra.mxu0 0.0
    %570 = vmatpush.msra.mxu0 0.0
    %571 = vmatpush.msra.mxu0 0.0
    %572 = vmatpush.msra.mxu0 0.0
    %573 = vmatpush.msra.mxu0 0.0
    %574 = vmatpush.msra.mxu0 0.0
    %575 = vmatpush.msra.mxu0 0.0
    %576 = vmatpush.msra.mxu0 0.0
    %577 = vmatpush.msra.mxu0 0.0
    %578 = vmatpush.msra.mxu0 %v561
    %579 = vmatmul.f32.gmra.mxu0 %v557
    %v580 = vpop.f32.mrf.mxu0
    %v581 = vadd.f32 %v553, %v580
    %582 = vdwg.mxu0
    %v583 = vxor.u32 %v581, 2147483648
    %v584 = vmul.f32 %v583, 1.442695
    %v585 = vpow.pop %v584
    %v586 = vadd.f32 %v585, 1.0
    %v587 = vrcp.pop %v586
    %v588 = vmul.f32 %v586, %v587
    %v589 = vsub.f32 1.0, %v588
    %v590 = vmul.f32 %v587, %v589
    %v591 = vadd.f32 %v587, %v590
    %vm592 = vweird.f32 %v586
    %vm593 = vweird.f32 %v587
    %vm594 = vmor %vm592, %vm593
    %v595 = vsel %vm594, %v587, %v591
    %v596 = vand.u32 2147483647, %v586
    %vm597 = vcmp.eq.f32.partialorder %v596, 8.507059e+37
    %v598 = vand.u32 %v586, 2147483648
    %v599 = vor.u32 1.1754944e-38, %v598
    %v600 = vsel %vm597, %v599, %v595
    %v601 = vmul.f32 1.0, %v600
    %v602 = vperm.slane %v601, 0
    %v603 = vlaneseq
    %v604 = vshrl.u32 %v603, 7
    %606 = vset.pattern.permute.xlu0 %v604
    %607 = vperm.xlu0 %606, %v602
    %v608 = vpop.permute.xlu0 %607
    %v609 = vlaneseq
    %v610 = vshrl.u32 %v609, 7
    %v611 = vadd.s32 %v610, 8
    %612 = vset.pattern.permute.xlu0 %v611
    %613 = vperm.xlu0 %612, %v602
    %v614 = vpop.permute.xlu0 %613
    %v615 = vlaneseq
    %v616 = vshrl.u32 %v615, 7
    %v617 = vadd.s32 %v616, 16
    %618 = vset.pattern.permute.xlu0 %v617
    %619 = vperm.xlu0 %618, %v602
    %v620 = vpop.permute.xlu0 %619
    %v621 = vlaneseq
    %v622 = vshrl.u32 %v621, 7
    %v623 = vadd.s32 %v622, 24
    %624 = vset.pattern.permute.xlu0 %v623
    %625 = vperm.xlu0 %624, %v602
    %v626 = vpop.permute.xlu0 %625
    %v627 = vlaneseq
    %v628 = vshrl.u32 %v627, 7
    %v629 = vadd.s32 %v628, 32
    %630 = vset.pattern.permute.xlu0 %v629
    %631 = vperm.xlu0 %630, %v602
    %v632 = vpop.permute.xlu0 %631
    %v633 = vlaneseq
    %v634 = vshrl.u32 %v633, 7
    %v635 = vadd.s32 %v634, 40
    %636 = vset.pattern.permute.xlu0 %v635
    %637 = vperm.xlu0 %636, %v602
    %v638 = vpop.permute.xlu0 %637
    %v639 = vlaneseq
    %v640 = vshrl.u32 %v639, 7
    %v641 = vadd.s32 %v640, 48
    %642 = vset.pattern.permute.xlu0 %v641
    %643 = vperm.xlu0 %642, %v602
    %v644 = vpop.permute.xlu0 %643
    %v645 = vlaneseq
    %v646 = vshrl.u32 %v645, 7
    %v647 = vadd.s32 %v646, 56
    %648 = vset.pattern.permute.xlu0 %v647
    %649 = vperm.xlu0 %648, %v602
    %v650 = vpop.permute.xlu0 %649
    %v651 = vperm.slane %v601, 1
    %v652 = vlaneseq
    %v653 = vshrl.u32 %v652, 7
    %655 = vset.pattern.permute.xlu0 %v653
    %656 = vperm.xlu0 %655, %v651
    %v657 = vpop.permute.xlu0 %656
    %v658 = vlaneseq
    %v659 = vshrl.u32 %v658, 7
    %v660 = vadd.s32 %v659, 8
    %661 = vset.pattern.permute.xlu0 %v660
    %662 = vperm.xlu0 %661, %v651
    %v663 = vpop.permute.xlu0 %662
    %v664 = vlaneseq
    %v665 = vshrl.u32 %v664, 7
    %v666 = vadd.s32 %v665, 16
    %667 = vset.pattern.permute.xlu0 %v666
    %668 = vperm.xlu0 %667, %v651
    %v669 = vpop.permute.xlu0 %668
    %v670 = vlaneseq
    %v671 = vshrl.u32 %v670, 7
    %v672 = vadd.s32 %v671, 24
    %673 = vset.pattern.permute.xlu0 %v672
    %674 = vperm.xlu0 %673, %v651
    %v675 = vpop.permute.xlu0 %674
    %v676 = vlaneseq
    %v677 = vshrl.u32 %v676, 7
    %v678 = vadd.s32 %v677, 32
    %679 = vset.pattern.permute.xlu0 %v678
    %680 = vperm.xlu0 %679, %v651
    %v681 = vpop.permute.xlu0 %680
    %v682 = vlaneseq
    %v683 = vshrl.u32 %v682, 7
    %v684 = vadd.s32 %v683, 40
    %685 = vset.pattern.permute.xlu0 %v684
    %686 = vperm.xlu0 %685, %v651
    %v687 = vpop.permute.xlu0 %686
    %v688 = vlaneseq
    %v689 = vshrl.u32 %v688, 7
    %v690 = vadd.s32 %v689, 48
    %691 = vset.pattern.permute.xlu0 %v690
    %692 = vperm.xlu0 %691, %v651
    %v693 = vpop.permute.xlu0 %692
    %v694 = vlaneseq
    %v695 = vshrl.u32 %v694, 7
    %v696 = vadd.s32 %v695, 56
    %697 = vset.pattern.permute.xlu0 %v696
    %698 = vperm.xlu0 %697, %v651
    %v699 = vpop.permute.xlu0 %698
    %v700 = vperm.slane %v601, 2
    %v701 = vlaneseq
    %v702 = vshrl.u32 %v701, 7
    %704 = vset.pattern.permute.xlu0 %v702
    %705 = vperm.xlu0 %704, %v700
    %v706 = vpop.permute.xlu0 %705
    %v707 = vlaneseq
    %v708 = vshrl.u32 %v707, 7
    %v709 = vadd.s32 %v708, 8
    %710 = vset.pattern.permute.xlu0 %v709
    %711 = vperm.xlu0 %710, %v700
    %v712 = vpop.permute.xlu0 %711
    %v713 = vlaneseq
    %v714 = vshrl.u32 %v713, 7
    %v715 = vadd.s32 %v714, 16
    %716 = vset.pattern.permute.xlu0 %v715
    %717 = vperm.xlu0 %716, %v700
    %v718 = vpop.permute.xlu0 %717
    %v719 = vlaneseq
    %v720 = vshrl.u32 %v719, 7
    %v721 = vadd.s32 %v720, 24
    %722 = vset.pattern.permute.xlu0 %v721
    %723 = vperm.xlu0 %722, %v700
    %v724 = vpop.permute.xlu0 %723
    %v725 = vlaneseq
    %v726 = vshrl.u32 %v725, 7
    %v727 = vadd.s32 %v726, 32
    %728 = vset.pattern.permute.xlu0 %v727
    %729 = vperm.xlu0 %728, %v700
    %v730 = vpop.permute.xlu0 %729
    %v731 = vlaneseq
    %v732 = vshrl.u32 %v731, 7
    %v733 = vadd.s32 %v732, 40
    %734 = vset.pattern.permute.xlu0 %v733
    %735 = vperm.xlu0 %734, %v700
    %v736 = vpop.permute.xlu0 %735
    %v737 = vlaneseq
    %v738 = vshrl.u32 %v737, 7
    %v739 = vadd.s32 %v738, 48
    %740 = vset.pattern.permute.xlu0 %v739
    %741 = vperm.xlu0 %740, %v700
    %v742 = vpop.permute.xlu0 %741
    %v743 = vlaneseq
    %v744 = vshrl.u32 %v743, 7
    %v745 = vadd.s32 %v744, 56
    %746 = vset.pattern.permute.xlu0 %v745
    %747 = vperm.xlu0 %746, %v700
    %v748 = vpop.permute.xlu0 %747
    %v749 = vperm.slane %v601, 3
    %v750 = vlaneseq
    %v751 = vshrl.u32 %v750, 7
    %753 = vset.pattern.permute.xlu0 %v751
    %754 = vperm.xlu0 %753, %v749
    %v755 = vpop.permute.xlu0 %754
    %v756 = vlaneseq
    %v757 = vshrl.u32 %v756, 7
    %v758 = vadd.s32 %v757, 8
    %759 = vset.pattern.permute.xlu0 %v758
    %760 = vperm.xlu0 %759, %v749
    %v761 = vpop.permute.xlu0 %760
    %v762 = vlaneseq
    %v763 = vshrl.u32 %v762, 7
    %v764 = vadd.s32 %v763, 16
    %765 = vset.pattern.permute.xlu0 %v764
    %766 = vperm.xlu0 %765, %v749
    %v767 = vpop.permute.xlu0 %766
    %v768 = vlaneseq
    %v769 = vshrl.u32 %v768, 7
    %v770 = vadd.s32 %v769, 24
    %771 = vset.pattern.permute.xlu0 %v770
    %772 = vperm.xlu0 %771, %v749
    %v773 = vpop.permute.xlu0 %772
    %v774 = vlaneseq
    %v775 = vshrl.u32 %v774, 7
    %v776 = vadd.s32 %v775, 32
    %777 = vset.pattern.permute.xlu0 %v776
    %778 = vperm.xlu0 %777, %v749
    %v779 = vpop.permute.xlu0 %778
    %v780 = vlaneseq
    %v781 = vshrl.u32 %v780, 7
    %v782 = vadd.s32 %v781, 40
    %783 = vset.pattern.permute.xlu0 %v782
    %784 = vperm.xlu0 %783, %v749
    %v785 = vpop.permute.xlu0 %784
    %v786 = vlaneseq
    %v787 = vshrl.u32 %v786, 7
    %v788 = vadd.s32 %v787, 48
    %789 = vset.pattern.permute.xlu0 %v788
    %790 = vperm.xlu0 %789, %v749
    %v791 = vpop.permute.xlu0 %790
    %v792 = vlaneseq
    %v793 = vshrl.u32 %v792, 7
    %v794 = vadd.s32 %v793, 56
    %795 = vset.pattern.permute.xlu0 %v794
    %796 = vperm.xlu0 %795, %v749
    %v797 = vpop.permute.xlu0 %796
    %v798 = vperm.slane %v601, 4
    %v799 = vlaneseq
    %v800 = vshrl.u32 %v799, 7
    %802 = vset.pattern.permute.xlu0 %v800
    %803 = vperm.xlu0 %802, %v798
    %v804 = vpop.permute.xlu0 %803
    %v805 = vlaneseq
    %v806 = vshrl.u32 %v805, 7
    %v807 = vadd.s32 %v806, 8
    %808 = vset.pattern.permute.xlu0 %v807
    %809 = vperm.xlu0 %808, %v798
    %v810 = vpop.permute.xlu0 %809
    %v811 = vlaneseq
    %v812 = vshrl.u32 %v811, 7
    %v813 = vadd.s32 %v812, 16
    %814 = vset.pattern.permute.xlu0 %v813
    %815 = vperm.xlu0 %814, %v798
    %v816 = vpop.permute.xlu0 %815
    %v817 = vlaneseq
    %v818 = vshrl.u32 %v817, 7
    %v819 = vadd.s32 %v818, 24
    %820 = vset.pattern.permute.xlu0 %v819
    %821 = vperm.xlu0 %820, %v798
    %v822 = vpop.permute.xlu0 %821
    %v823 = vlaneseq
    %v824 = vshrl.u32 %v823, 7
    %v825 = vadd.s32 %v824, 32
    %826 = vset.pattern.permute.xlu0 %v825
    %827 = vperm.xlu0 %826, %v798
    %v828 = vpop.permute.xlu0 %827
    %v829 = vlaneseq
    %v830 = vshrl.u32 %v829, 7
    %v831 = vadd.s32 %v830, 40
    %832 = vset.pattern.permute.xlu0 %v831
    %833 = vperm.xlu0 %832, %v798
    %v834 = vpop.permute.xlu0 %833
    %v835 = vlaneseq
    %v836 = vshrl.u32 %v835, 7
    %v837 = vadd.s32 %v836, 48
    %838 = vset.pattern.permute.xlu0 %v837
    %839 = vperm.xlu0 %838, %v798
    %v840 = vpop.permute.xlu0 %839
    %v841 = vlaneseq
    %v842 = vshrl.u32 %v841, 7
    %v843 = vadd.s32 %v842, 56
    %844 = vset.pattern.permute.xlu0 %v843
    %845 = vperm.xlu0 %844, %v798
    %v846 = vpop.permute.xlu0 %845
    %v847 = vperm.slane %v601, 5
    %v848 = vlaneseq
    %v849 = vshrl.u32 %v848, 7
    %851 = vset.pattern.permute.xlu0 %v849
    %852 = vperm.xlu0 %851, %v847
    %v853 = vpop.permute.xlu0 %852
    %v854 = vlaneseq
    %v855 = vshrl.u32 %v854, 7
    %v856 = vadd.s32 %v855, 8
    %857 = vset.pattern.permute.xlu0 %v856
    %858 = vperm.xlu0 %857, %v847
    %v859 = vpop.permute.xlu0 %858
    %v860 = vlaneseq
    %v861 = vshrl.u32 %v860, 7
    %v862 = vadd.s32 %v861, 16
    %863 = vset.pattern.permute.xlu0 %v862
    %864 = vperm.xlu0 %863, %v847
    %v865 = vpop.permute.xlu0 %864
    %v866 = vlaneseq
    %v867 = vshrl.u32 %v866, 7
    %v868 = vadd.s32 %v867, 24
    %869 = vset.pattern.permute.xlu0 %v868
    %870 = vperm.xlu0 %869, %v847
    %v871 = vpop.permute.xlu0 %870
    %v872 = vlaneseq
    %v873 = vshrl.u32 %v872, 7
    %v874 = vadd.s32 %v873, 32
    %875 = vset.pattern.permute.xlu0 %v874
    %876 = vperm.xlu0 %875, %v847
    %v877 = vpop.permute.xlu0 %876
    %v878 = vlaneseq
    %v879 = vshrl.u32 %v878, 7
    %v880 = vadd.s32 %v879, 40
    %881 = vset.pattern.permute.xlu0 %v880
    %882 = vperm.xlu0 %881, %v847
    %v883 = vpop.permute.xlu0 %882
    %v884 = vlaneseq
    %v885 = vshrl.u32 %v884, 7
    %v886 = vadd.s32 %v885, 48
    %887 = vset.pattern.permute.xlu0 %v886
    %888 = vperm.xlu0 %887, %v847
    %v889 = vpop.permute.xlu0 %888
    %v890 = vlaneseq
    %v891 = vshrl.u32 %v890, 7
    %v892 = vadd.s32 %v891, 56
    %893 = vset.pattern.permute.xlu0 %v892
    %894 = vperm.xlu0 %893, %v847
    %v895 = vpop.permute.xlu0 %894
    %v896 = vperm.slane %v601, 6
    %v897 = vlaneseq
    %v898 = vshrl.u32 %v897, 7
    %900 = vset.pattern.permute.xlu0 %v898
    %901 = vperm.xlu0 %900, %v896
    %v902 = vpop.permute.xlu0 %901
    %v903 = vlaneseq
    %v904 = vshrl.u32 %v903, 7
    %v905 = vadd.s32 %v904, 8
    %906 = vset.pattern.permute.xlu0 %v905
    %907 = vperm.xlu0 %906, %v896
    %v908 = vpop.permute.xlu0 %907
    %v909 = vlaneseq
    %v910 = vshrl.u32 %v909, 7
    %v911 = vadd.s32 %v910, 16
    %912 = vset.pattern.permute.xlu0 %v911
    %913 = vperm.xlu0 %912, %v896
    %v914 = vpop.permute.xlu0 %913
    %v915 = vlaneseq
    %v916 = vshrl.u32 %v915, 7
    %v917 = vadd.s32 %v916, 24
    %918 = vset.pattern.permute.xlu0 %v917
    %919 = vperm.xlu0 %918, %v896
    %v920 = vpop.permute.xlu0 %919
    %v921 = vlaneseq
    %v922 = vshrl.u32 %v921, 7
    %v923 = vadd.s32 %v922, 32
    %924 = vset.pattern.permute.xlu0 %v923
    %925 = vperm.xlu0 %924, %v896
    %v926 = vpop.permute.xlu0 %925
    %v927 = vlaneseq
    %v928 = vshrl.u32 %v927, 7
    %v929 = vadd.s32 %v928, 40
    %930 = vset.pattern.permute.xlu0 %v929
    %931 = vperm.xlu0 %930, %v896
    %v932 = vpop.permute.xlu0 %931
    %v933 = vlaneseq
    %v934 = vshrl.u32 %v933, 7
    %v935 = vadd.s32 %v934, 48
    %936 = vset.pattern.permute.xlu0 %v935
    %937 = vperm.xlu0 %936, %v896
    %v938 = vpop.permute.xlu0 %937
    %v939 = vlaneseq
    %v940 = vshrl.u32 %v939, 7
    %v941 = vadd.s32 %v940, 56
    %942 = vset.pattern.permute.xlu0 %v941
    %943 = vperm.xlu0 %942, %v896
    %v944 = vpop.permute.xlu0 %943
    %v945 = vperm.slane %v601, 7
    %v946 = vlaneseq
    %v947 = vshrl.u32 %v946, 7
    %949 = vset.pattern.permute.xlu0 %v947
    %950 = vperm.xlu0 %949, %v945
    %v951 = vpop.permute.xlu0 %950
    %v952 = vlaneseq
    %v953 = vshrl.u32 %v952, 7
    %v954 = vadd.s32 %v953, 8
    %955 = vset.pattern.permute.xlu0 %v954
    %956 = vperm.xlu0 %955, %v945
    %v957 = vpop.permute.xlu0 %956
    %v958 = vlaneseq
    %v959 = vshrl.u32 %v958, 7
    %v960 = vadd.s32 %v959, 16
    %961 = vset.pattern.permute.xlu0 %v960
    %962 = vperm.xlu0 %961, %v945
    %v963 = vpop.permute.xlu0 %962
    %v964 = vlaneseq
    %v965 = vshrl.u32 %v964, 7
    %v966 = vadd.s32 %v965, 24
    %967 = vset.pattern.permute.xlu0 %v966
    %968 = vperm.xlu0 %967, %v945
    %v969 = vpop.permute.xlu0 %968
    %v970 = vlaneseq
    %v971 = vshrl.u32 %v970, 7
    %v972 = vadd.s32 %v971, 32
    %973 = vset.pattern.permute.xlu0 %v972
    %974 = vperm.xlu0 %973, %v945
    %v975 = vpop.permute.xlu0 %974
    %v976 = vlaneseq
    %v977 = vshrl.u32 %v976, 7
    %v978 = vadd.s32 %v977, 40
    %979 = vset.pattern.permute.xlu0 %v978
    %980 = vperm.xlu0 %979, %v945
    %v981 = vpop.permute.xlu0 %980
    %v982 = vlaneseq
    %v983 = vshrl.u32 %v982, 7
    %v984 = vadd.s32 %v983, 48
    %985 = vset.pattern.permute.xlu0 %v984
    %986 = vperm.xlu0 %985, %v945
    %v987 = vpop.permute.xlu0 %986
    %v988 = vlaneseq
    %v989 = vshrl.u32 %v988, 7
    %v990 = vadd.s32 %v989, 56
    %991 = vset.pattern.permute.xlu0 %v990
    %992 = vperm.xlu0 %991, %v945
    %v993 = vpop.permute.xlu0 %992
    %v994 = vmul.f32 %v37, %v608
    %v995 = vmul.f32 %v38, %v614
    %v996 = vmul.f32 %v39, %v620
    %v997 = vmul.f32 %v40, %v626
    %v998 = vmul.f32 %v41, %v632
    %v999 = vmul.f32 %v42, %v638
    %v1000 = vmul.f32 %v43, %v644
    %v1001 = vmul.f32 %v44, %v650
    %v1002 = vmul.f32 %v45, %v657
    %v1003 = vmul.f32 %v46, %v663
    %v1004 = vmul.f32 %v47, %v669
    %v1005 = vmul.f32 %v48, %v675
    %v1006 = vmul.f32 %v49, %v681
    %v1007 = vmul.f32 %v50, %v687
    %v1008 = vmul.f32 %v51, %v693
    %v1009 = vmul.f32 %v52, %v699
    %v1010 = vmul.f32 %v53, %v706
    %v1011 = vmul.f32 %v54, %v712
    %v1012 = vmul.f32 %v55, %v718
    %v1013 = vmul.f32 %v56, %v724
    %v1014 = vmul.f32 %v57, %v730
    %v1015 = vmul.f32 %v58, %v736
    %v1016 = vmul.f32 %v59, %v742
    %v1017 = vmul.f32 %v60, %v748
    %v1018 = vmul.f32 %v61, %v755
    %v1019 = vmul.f32 %v62, %v761
    %v1020 = vmul.f32 %v63, %v767
    %v1021 = vmul.f32 %v64, %v773
    %v1022 = vmul.f32 %v65, %v779
    %v1023 = vmul.f32 %v66, %v785
    %v1024 = vmul.f32 %v67, %v791
    %v1025 = vmul.f32 %v68, %v797
    %v1026 = vmul.f32 %v69, %v804
    %v1027 = vmul.f32 %v70, %v810
    %v1028 = vmul.f32 %v71, %v816
    %v1029 = vmul.f32 %v72, %v822
    %v1030 = vmul.f32 %v73, %v828
    %v1031 = vmul.f32 %v74, %v834
    %v1032 = vmul.f32 %v75, %v840
    %v1033 = vmul.f32 %v76, %v846
    %v1034 = vmul.f32 %v77, %v853
    %v1035 = vmul.f32 %v78, %v859
    %v1036 = vmul.f32 %v79, %v865
    %v1037 = vmul.f32 %v80, %v871
    %v1038 = vmul.f32 %v81, %v877
    %v1039 = vmul.f32 %v82, %v883
    %v1040 = vmul.f32 %v83, %v889
    %v1041 = vmul.f32 %v84, %v895
    %v1042 = vmul.f32 %v85, %v902
    %v1043 = vmul.f32 %v86, %v908
    %v1044 = vmul.f32 %v87, %v914
    %v1045 = vmul.f32 %v88, %v920
    %v1046 = vmul.f32 %v89, %v926
    %v1047 = vmul.f32 %v90, %v932
    %v1048 = vmul.f32 %v91, %v938
    %v1049 = vmul.f32 %v92, %v944
    %v1050 = vmul.f32 %v93, %v951
    %v1051 = vmul.f32 %v94, %v957
    %v1052 = vmul.f32 %v95, %v963
    %v1053 = vmul.f32 %v96, %v969
    %v1054 = vmul.f32 %v97, %v975
    %v1055 = vmul.f32 %v98, %v981
    %v1056 = vmul.f32 %v99, %v987
    %v1057 = vmul.f32 %v100, %v993
    %1058 = vst [vmem:[#allocation5] sm:$0xff] %v994
    %1059 = vst [vmem:[#allocation5 + $0x8] sm:$0xff] %v995
    %1060 = vst [vmem:[#allocation5 + $0x10] sm:$0xff] %v996
    %1061 = vst [vmem:[#allocation5 + $0x18] sm:$0xff] %v997
    %1062 = vst [vmem:[#allocation5 + $0x20] sm:$0xff] %v998
    %1063 = vst [vmem:[#allocation5 + $0x28] sm:$0xff] %v999
    %1064 = vst [vmem:[#allocation5 + $0x30] sm:$0xff] %v1000
    %1065 = vst [vmem:[#allocation5 + $0x38] sm:$0xff] %v1001
    %1066 = vst [vmem:[#allocation5 + $0x40] sm:$0xff] %v1002
    %1067 = vst [vmem:[#allocation5 + $0x48] sm:$0xff] %v1003
    %1068 = vst [vmem:[#allocation5 + $0x50] sm:$0xff] %v1004
    %1069 = vst [vmem:[#allocation5 + $0x58] sm:$0xff] %v1005
    %1070 = vst [vmem:[#allocation5 + $0x60] sm:$0xff] %v1006
    %1071 = vst [vmem:[#allocation5 + $0x68] sm:$0xff] %v1007
    %1072 = vst [vmem:[#allocation5 + $0x70] sm:$0xff] %v1008
    %1073 = vst [vmem:[#allocation5 + $0x78] sm:$0xff] %v1009
    %1074 = vst [vmem:[#allocation5 + $0x80] sm:$0xff] %v1010
    %1075 = vst [vmem:[#allocation5 + $0x88] sm:$0xff] %v1011
    %1076 = vst [vmem:[#allocation5 + $0x90] sm:$0xff] %v1012
    %1077 = vst [vmem:[#allocation5 + $0x98] sm:$0xff] %v1013
    %1078 = vst [vmem:[#allocation5 + $0xa0] sm:$0xff] %v1014
    %1079 = vst [vmem:[#allocation5 + $0xa8] sm:$0xff] %v1015
    %1080 = vst [vmem:[#allocation5 + $0xb0] sm:$0xff] %v1016
    %1081 = vst [vmem:[#allocation5 + $0xb8] sm:$0xff] %v1017
    %1082 = vst [vmem:[#allocation5 + $0xc0] sm:$0xff] %v1018
    %1083 = vst [vmem:[#allocation5 + $0xc8] sm:$0xff] %v1019
    %1084 = vst [vmem:[#allocation5 + $0xd0] sm:$0xff] %v1020
    %1085 = vst [vmem:[#allocation5 + $0xd8] sm:$0xff] %v1021
    %1086 = vst [vmem:[#allocation5 + $0xe0] sm:$0xff] %v1022
    %1087 = vst [vmem:[#allocation5 + $0xe8] sm:$0xff] %v1023
    %1088 = vst [vmem:[#allocation5 + $0xf0] sm:$0xff] %v1024
    %1089 = vst [vmem:[#allocation5 + $0xf8] sm:$0xff] %v1025
    %1090 = vst [vmem:[#allocation5 + $0x100] sm:$0xff] %v1026
    %1091 = vst [vmem:[#allocation5 + $0x108] sm:$0xff] %v1027
    %1092 = vst [vmem:[#allocation5 + $0x110] sm:$0xff] %v1028
    %1093 = vst [vmem:[#allocation5 + $0x118] sm:$0xff] %v1029
    %1094 = vst [vmem:[#allocation5 + $0x120] sm:$0xff] %v1030
    %1095 = vst [vmem:[#allocation5 + $0x128] sm:$0xff] %v1031
    %1096 = vst [vmem:[#allocation5 + $0x130] sm:$0xff] %v1032
    %1097 = vst [vmem:[#allocation5 + $0x138] sm:$0xff] %v1033
    %1098 = vst [vmem:[#allocation5 + $0x140] sm:$0xff] %v1034
    %1099 = vst [vmem:[#allocation5 + $0x148] sm:$0xff] %v1035
    %1100 = vst [vmem:[#allocation5 + $0x150] sm:$0xff] %v1036
    %1101 = vst [vmem:[#allocation5 + $0x158] sm:$0xff] %v1037
    %1102 = vst [vmem:[#allocation5 + $0x160] sm:$0xff] %v1038
    %1103 = vst [vmem:[#allocation5 + $0x168] sm:$0xff] %v1039
    %1104 = vst [vmem:[#allocation5 + $0x170] sm:$0xff] %v1040
    %1105 = vst [vmem:[#allocation5 + $0x178] sm:$0xff] %v1041
    %1106 = vst [vmem:[#allocation5 + $0x180] sm:$0xff] %v1042
    %1107 = vst [vmem:[#allocation5 + $0x188] sm:$0xff] %v1043
    %1108 = vst [vmem:[#allocation5 + $0x190] sm:$0xff] %v1044
    %1109 = vst [vmem:[#allocation5 + $0x198] sm:$0xff] %v1045
    %1110 = vst [vmem:[#allocation5 + $0x1a0] sm:$0xff] %v1046
    %1111 = vst [vmem:[#allocation5 + $0x1a8] sm:$0xff] %v1047
    %1112 = vst [vmem:[#allocation5 + $0x1b0] sm:$0xff] %v1048
    %1113 = vst [vmem:[#allocation5 + $0x1b8] sm:$0xff] %v1049
    %1114 = vst [vmem:[#allocation5 + $0x1c0] sm:$0xff] %v1050
    %1115 = vst [vmem:[#allocation5 + $0x1c8] sm:$0xff] %v1051
    %1116 = vst [vmem:[#allocation5 + $0x1d0] sm:$0xff] %v1052
    %1117 = vst [vmem:[#allocation5 + $0x1d8] sm:$0xff] %v1053
    %1118 = vst [vmem:[#allocation5 + $0x1e0] sm:$0xff] %v1054
    %1119 = vst [vmem:[#allocation5 + $0x1e8] sm:$0xff] %v1055
    %1120 = vst [vmem:[#allocation5 + $0x1f0] sm:$0xff] %v1056
    %1121 = vst [vmem:[#allocation5 + $0x1f8] sm:$0xff] %v1057
    // Predicated region
    $region26: #{tpu_custom_call.1} parent=1 // pred_check
      _
    $region27: #{tpu_custom_call.1} parent=1 // pred_check_branch
      %1123 = sbr.rel (0) target = $region29
    $region28: #{tpu_custom_call.1} parent=1 // pred_region
      %1125 = vsyncadd [#allocation4], 0
      %s1126 = sshll.u32 [#allocation5], 4
      %s1127 = int_to_ptr.vmem [resolvable:$true] %s1126
      %s1128 = sshll.u32 %s5, 4
      %s1129 = int_to_ptr.hbm [resolvable:$true] %s1128
      %1134 = dma.vmem_to_hbm [thread:$0]  %s1127, 8192, %s1129, [#allocation4], 128, 128, 8
    $region29: #{tpu_custom_call.1} parent=1 // pred_fallthru
      _
    // Predicated region
    $region30: #{tpu_custom_call.1} parent=1 // pred_check
      _
    $region31: #{tpu_custom_call.1} parent=1 // pred_check_branch
      %1136 = sbr.rel (0) target = $region33
    $region32: #{tpu_custom_call.1} parent=1 // pred_region
      %1138 = dma.done [#allocation4], 8192
    $region33: #{tpu_custom_call.1} parent=1 // pred_fallthru
      _
    %1139 = vsyncpa [#allocation3], 1
    %1140 = vsyncpa [#allocation4], 1

</llo_original>
